<compile_context>
chip_gen: v6e
topology: v6e:2x2x1
jax: 0.10.0
libtpu: 0.0.40
codegen_flags: <defaults>
</compile_context>

<pallas_src>
import jax
import jax.numpy as jnp
from jax.experimental import pallas as pl
from jax.experimental.pallas import tpu as pltpu

ALPHA = 0.25
GAMMA = 2.0            # kernel hard-codes gamma == 2 via an explicit square
assert GAMMA == 2.0, "kernel hard-codes gamma == 2 (q*q); adjust kernel for other gammas"

LANES = 128


def _cdiv(a, b):
    return -(-a // b)


def _round_up(a, b):
    return _cdiv(a, b) * b


def _device_kind():
    try:
        return jax.devices()[0].device_kind.lower()
    except Exception:
        return ""


def focal_loss(logits, targets, block_rows=None):
    """Sigmoid focal loss (alpha=0.25, gamma=2, mean reduction). Returns f32 scalar."""
    assert logits.shape == targets.shape
    n_valid = int(logits.size)
    assert n_valid > 0

    kind = _device_kind()
    is_v7 = ("v7" in kind) or ("tpu7" in kind)
    num_cores = 2 if is_v7 else 1                    # 2 TCs only on v7x
    if block_rows is None:
        block_rows = 4096 if is_v7 else 2048         # ~2-4 MiB logits tiles
    br_cap = max(32, _round_up(block_rows, 32))      # 32: int8 sublane packing

    # Flatten (free bitcast). Hard 0/1 labels travel as int8 (1 B/elem); soft
    # float targets keep their dtype. The kernel upcasts to f32 either way.
    x_flat = logits.reshape(-1)
    t_flat = targets.reshape(-1)
    if not jnp.issubdtype(targets.dtype, jnp.floating):
        t_flat = t_flat.astype(jnp.int8)

    # Only a <128-element pad, and only when numel is not lane-aligned; padded
    # values are irrelevant because the kernel masks by global element index.
    padded_n = _round_up(n_valid, LANES)
    pad = padded_n - n_valid
    if pad:
        x_flat = jnp.pad(x_flat, (0, pad))
        t_flat = jnp.pad(t_flat, (0, pad))
    rows = padded_n // LANES
    x2d = x_flat.reshape(rows, LANES)                # free reshape (row-major)
    t2d = t_flat.reshape(rows, LANES)

    # Tiling: br == rows (full dims) for single-block inputs, else a multiple
    # of 32. Only the last block can be partial; any surplus (core, step) slot
    # is clamped onto the last block by the index_map and masked to zero.
    br = min(br_cap, rows)
    total_blocks = _cdiv(rows, br)
    num_cores = min(num_cores, total_blocks)
    steps = _cdiv(total_blocks, num_cores)
    last_block = total_blocks - 1

    def in_map(c, i):
        return (jnp.minimum(c * steps + i, last_block), 0)

    def kernel(x_ref, t_ref, out_ref):
        c = pl.program_id(0)
        i = pl.program_id(1)

        # Output block (1, 1, 128) is resident across the reduction axis and
        # doubles as the accumulator (no (br, 128) VMEM scratch).
        @pl.when(i == 0)
        def _():
            out_ref[...] = jnp.zeros_like(out_ref)

        x = x_ref[...].astype(jnp.float32)
        t = t_ref[...].astype(jnp.float32)

        # Single EUP exp shared by the BCE term and the sigmoid.
        e = jnp.exp(-jnp.abs(x))
        # Numerically stable BCE with logits.
        ce = jnp.maximum(x, 0.0) - x * t + jnp.log1p(e)
        # sigmoid(x) without a second exp (exact divide keeps rtol=1e-5).
        inv = 1.0 / (1.0 + e)
        p = jnp.where(x >= 0.0, inv, e * inv)

        # Algebraic trim: q = 1 - p_t = p + t - 2*p*t ; alpha_t = (1-a)+(2a-1)*t.
        q = p + t - 2.0 * p * t
        alpha_t = (1.0 - ALPHA) + (2.0 * ALPHA - 1.0) * t
        # gamma == 2 -> q*q (VPU) instead of pow (EUP exp+log).
        loss = alpha_t * (q * q) * ce
        # Few simultaneously-live (br,128) temporaries (x,t,e,ce,p,q,loss);
        # Mosaic fuses the chain per-vreg, so no spill pressure at br<=4096.

        blk = c * steps + i                      # un-clamped logical block id
        row_start = blk * br
        block_end = (row_start + br) * LANES     # int32: fine below ~2**31 elems

        @pl.when(block_end <= n_valid)
        def _():
            # Fully-valid block: zero masking cost on the hot path.
            out_ref[0, :, :] += jnp.sum(loss, axis=0, keepdims=True)

        @pl.when(block_end > n_valid)
        def _():
            # Partial / duplicated tail block: mask by global element index so
            # garbage rows (Pallas partial-block reads) and the <128-elem lane
            # pad contribute exactly zero.
            r_iota = jax.lax.broadcasted_iota(jnp.int32, loss.shape, 0)
            l_iota = jax.lax.broadcasted_iota(jnp.int32, loss.shape, 1)
            gidx = (row_start + r_iota) * LANES + l_iota
            masked = jnp.where(gidx < n_valid, loss, 0.0)
            out_ref[0, :, :] += jnp.sum(masked, axis=0, keepdims=True)

    in_bytes = x2d.dtype.itemsize + t2d.dtype.itemsize
    cost = pl.CostEstimate(
        flops=20 * padded_n,
        transcendentals=2 * padded_n,
        bytes_accessed=padded_n * in_bytes + num_cores * LANES * 4,
    )

    partials = pl.pallas_call(
        kernel,
        out_shape=jax.ShapeDtypeStruct((num_cores, 1, LANES), jnp.float32),
        grid_spec=pltpu.PrefetchScalarGridSpec(
            num_scalar_prefetch=0,
            grid=(num_cores, steps),
            in_specs=[
                pl.BlockSpec((br, LANES), in_map),
                pl.BlockSpec((br, LANES), in_map),
            ],
            out_specs=pl.BlockSpec((1, 1, LANES), lambda c, i: (c, 0, 0)),
        ),
        compiler_params=pltpu.CompilerParams(
            dimension_semantics=("parallel", "arbitrary"),
            vmem_limit_bytes=32 * 1024 * 1024,
        ),
        cost_estimate=cost,
    )(x2d, t2d)

    # Tiny cross-lane reduce + mean normalization outside the kernel.
    return jnp.sum(partials) / jnp.float32(n_valid)


def _focal_loss_ref(logits, targets):
    x = logits.astype(jnp.float32)
    t = targets.astype(jnp.float32)
    ce = jnp.maximum(x, 0.0) - x * t + jnp.log1p(jnp.exp(-jnp.abs(x)))
    p = jax.nn.sigmoid(x)
    p_t = p * t + (1 - p) * (1 - t)
    a_t = ALPHA * t + (1 - ALPHA) * (1 - t)
    return jnp.mean(a_t * (1 - p_t) ** GAMMA * ce)


if __name__ == "__main__":
    key = jax.random.PRNGKey(0)
    k1, k2 = jax.random.split(key)

    # NCHW, small shapes: batch=2, channels=4, spatial=16x16 -> 2048 elements
    x = jax.random.normal(k1, (2, 4, 16, 16), dtype=jnp.float32)
    # Hard binary labels (bool) -> travel through the kernel as an int8 stream.
    t = jax.random.bernoulli(k2, p=0.3, shape=(2, 4, 16, 16))

    loss = focal_loss(x, t)
    jax.block_until_ready(loss)

    ref = _focal_loss_ref(x, t)
    assert jnp.allclose(loss, ref, rtol=1e-5, atol=1e-6), (loss, ref)
    print("KERNEL_OK")
</pallas_src>

<mosaic_0001>
module attributes {stable_mosaic.version = 11 : i64} {
  func.func @kernel(%arg0: i32, %arg1: i32, %arg2: memref<16x128xf32, #tpu.memory_space<vmem>>, %arg3: memref<16x128xi8, #tpu.memory_space<vmem>>, %arg4: memref<1x1x128xf32, #tpu.memory_space<vmem>>) attributes {dimension_semantics = [#tpu.dimension_semantics<parallel>, #tpu.dimension_semantics<arbitrary>], iteration_bounds = array<i64: 1, 1>, scalar_prefetch = 0 : i64, scratch_operands = 0 : i64, tpu.core_type = #tpu.core_type<tc>, window_params = [{transform_indices = @transform_0, window_bounds = array<i64: 16, 128>}, {transform_indices = @transform_1, window_bounds = array<i64: 16, 128>}, {transform_indices = @transform_2, window_bounds = array<i64: 1, 1, 128>}]} {
    %c0_i32 = arith.constant 0 : i32
    %0 = arith.cmpi eq, %arg1, %c0_i32 : i32
    %1 = arith.extui %0 : i1 to i32
    %c0_i32_0 = arith.constant 0 : i32
    %2 = arith.cmpi ne, %1, %c0_i32_0 : i32
    scf.if %2 {
      %cst_15 = arith.constant 0.000000e+00 : f32
      %47 = vector.broadcast %cst_15 : f32 to vector<1x1x128xf32>
      %c0_16 = arith.constant 0 : index
      %c0_17 = arith.constant 0 : index
      %c0_18 = arith.constant 0 : index
      %48 = vector.load %arg4[%c0_16, %c0_17, %c0_18] : memref<1x1x128xf32, #tpu.memory_space<vmem>>, vector<1x1x128xf32>
      tpu.vector_store %arg4[%c0_16, %c0_17, %c0_18], %47 {strides = array<i32>} : memref<1x1x128xf32, #tpu.memory_space<vmem>>, vector<1x1x128xf32>,
    } else {
    }
    %c0 = arith.constant 0 : index
    %c0_1 = arith.constant 0 : index
    %3 = vector.load %arg2[%c0, %c0_1] : memref<16x128xf32, #tpu.memory_space<vmem>>, vector<16x128xf32>
    %c0_2 = arith.constant 0 : index
    %c0_3 = arith.constant 0 : index
    %4 = vector.load %arg3[%c0_2, %c0_3] : memref<16x128xi8, #tpu.memory_space<vmem>>, vector<16x128xi8>
    %5 = arith.sitofp %4 : vector<16x128xi8> to vector<16x128xf32>
    %6 = math.absf %3 : vector<16x128xf32>
    %cst = arith.constant 0.000000e+00 : f32
    %7 = vector.broadcast %cst : f32 to vector<16x128xf32>
    %8 = arith.subf %7, %6 : vector<16x128xf32>
    %9 = math.exp %8 : vector<16x128xf32>
    %cst_4 = arith.constant 0.000000e+00 : f32
    %10 = vector.broadcast %cst_4 : f32 to vector<16x128xf32>
    %11 = arith.maximumf %3, %10 : vector<16x128xf32>
    %12 = arith.mulf %3, %5 : vector<16x128xf32>
    %13 = arith.subf %11, %12 : vector<16x128xf32>
    %14 = math.log1p %9 : vector<16x128xf32>
    %15 = arith.addf %13, %14 : vector<16x128xf32>
    %cst_5 = arith.constant 1.000000e+00 : f32
    %16 = vector.broadcast %cst_5 : f32 to vector<16x128xf32>
    %17 = arith.addf %16, %9 : vector<16x128xf32>
    %cst_6 = arith.constant 1.000000e+00 : f32
    %18 = vector.broadcast %cst_6 : f32 to vector<16x128xf32>
    %19 = arith.divf %18, %17 : vector<16x128xf32>
    %cst_7 = arith.constant 0.000000e+00 : f32
    %20 = vector.broadcast %cst_7 : f32 to vector<16x128xf32>
    %21 = arith.cmpf oge, %3, %20 : vector<16x128xf32>
    %22 = arith.mulf %9, %19 : vector<16x128xf32>
    %23 = arith.select %21, %19, %22 : vector<16x128xi1>, vector<16x128xf32>
    %24 = arith.addf %23, %5 : vector<16x128xf32>
    %cst_8 = arith.constant 2.000000e+00 : f32
    %25 = vector.broadcast %cst_8 : f32 to vector<16x128xf32>
    %26 = arith.mulf %25, %23 : vector<16x128xf32>
    %27 = arith.mulf %26, %5 : vector<16x128xf32>
    %28 = arith.subf %24, %27 : vector<16x128xf32>
    %cst_9 = arith.constant -5.000000e-01 : f32
    %29 = vector.broadcast %cst_9 : f32 to vector<16x128xf32>
    %30 = arith.mulf %29, %5 : vector<16x128xf32>
    %cst_10 = arith.constant 7.500000e-01 : f32
    %31 = vector.broadcast %cst_10 : f32 to vector<16x128xf32>
    %32 = arith.addf %31, %30 : vector<16x128xf32>
    %33 = arith.mulf %28, %28 : vector<16x128xf32>
    %34 = arith.mulf %32, %33 : vector<16x128xf32>
    %35 = arith.mulf %34, %15 : vector<16x128xf32>
    %c1_i32 = arith.constant 1 : i32
    %36 = arith.muli %arg0, %c1_i32 : i32
    %37 = arith.addi %36, %arg1 : i32
    %c16_i32 = arith.constant 16 : i32
    %38 = arith.muli %37, %c16_i32 : i32
    %c16_i32_11 = arith.constant 16 : i32
    %39 = arith.addi %38, %c16_i32_11 : i32
    %c128_i32 = arith.constant 128 : i32
    %40 = arith.muli %39, %c128_i32 : i32
    %c2048_i32 = arith.constant 2048 : i32
    %41 = arith.cmpi sle, %40, %c2048_i32 : i32
    %42 = arith.extui %41 : i1 to i32
    %c0_i32_12 = arith.constant 0 : i32
    %43 = arith.cmpi ne, %42, %c0_i32_12 : i32
    scf.if %43 {
      %c0_15 = arith.constant 0 : index
      %c0_16 = arith.constant 0 : index
      %c0_17 = arith.constant 0 : index
      %47 = vector.load %arg4[%c0_15, %c0_16, %c0_17] : memref<1x1x128xf32, #tpu.memory_space<vmem>>, vector<1x1x128xf32>
      %48 = vector.shape_cast %47 : vector<1x1x128xf32> to vector<1x128xf32>
      %cst_18 = arith.constant dense<0.000000e+00> : vector<128xf32>
      %49 = vector.multi_reduction <add>, %35, %cst_18 [0] : vector<16x128xf32> to vector<128xf32>
      %50 = vector.shape_cast %49 : vector<128xf32> to vector<1x128xf32>
      %51 = arith.addf %48, %50 : vector<1x128xf32>
      %c0_19 = arith.constant 0 : index
      %c0_20 = arith.constant 0 : index
      %c0_21 = arith.constant 0 : index
      %52 = vector.load %arg4[%c0_19, %c0_20, %c0_21] : memref<1x1x128xf32, #tpu.memory_space<vmem>>, vector<1x1x128xf32>
      %53 = vector.shape_cast %52 : vector<1x1x128xf32> to vector<1x128xf32>
      %54 = vector.shape_cast %51 : vector<1x128xf32> to vector<1x1x128xf32>
      tpu.vector_store %arg4[%c0_19, %c0_20, %c0_21], %54 {strides = array<i32>} : memref<1x1x128xf32, #tpu.memory_space<vmem>>, vector<1x1x128xf32>,
    } else {
    }
    %c2048_i32_13 = arith.constant 2048 : i32
    %44 = arith.cmpi sgt, %40, %c2048_i32_13 : i32
    %45 = arith.extui %44 : i1 to i32
    %c0_i32_14 = arith.constant 0 : i32
    %46 = arith.cmpi ne, %45, %c0_i32_14 : i32
    scf.if %46 {
      %47 = tpu.iota {dimensions = array<i32: 0>} : vector<16x128xi32>
      %48 = tpu.iota {dimensions = array<i32: 1>} : vector<16x128xi32>
      %49 = vector.broadcast %38 : i32 to vector<16x128xi32>
      %50 = arith.addi %49, %47 : vector<16x128xi32>
      %c128_i32_15 = arith.constant 128 : i32
      %51 = vector.broadcast %c128_i32_15 : i32 to vector<16x128xi32>
      %52 = arith.muli %50, %51 : vector<16x128xi32>
      %53 = arith.addi %52, %48 : vector<16x128xi32>
      %c2048_i32_16 = arith.constant 2048 : i32
      %54 = vector.broadcast %c2048_i32_16 : i32 to vector<16x128xi32>
      %55 = arith.cmpi slt, %53, %54 : vector<16x128xi32>
      %cst_17 = arith.constant 0.000000e+00 : f32
      %56 = vector.broadcast %cst_17 : f32 to vector<16x128xf32>
      %57 = arith.select %55, %35, %56 : vector<16x128xi1>, vector<16x128xf32>
      %c0_18 = arith.constant 0 : index
      %c0_19 = arith.constant 0 : index
      %c0_20 = arith.constant 0 : index
      %58 = vector.load %arg4[%c0_18, %c0_19, %c0_20] : memref<1x1x128xf32, #tpu.memory_space<vmem>>, vector<1x1x128xf32>
      %59 = vector.shape_cast %58 : vector<1x1x128xf32> to vector<1x128xf32>
      %cst_21 = arith.constant dense<0.000000e+00> : vector<128xf32>
      %60 = vector.multi_reduction <add>, %57, %cst_21 [0] : vector<16x128xf32> to vector<128xf32>
      %61 = vector.shape_cast %60 : vector<128xf32> to vector<1x128xf32>
      %62 = arith.addf %59, %61 : vector<1x128xf32>
      %c0_22 = arith.constant 0 : index
      %c0_23 = arith.constant 0 : index
      %c0_24 = arith.constant 0 : index
      %63 = vector.load %arg4[%c0_22, %c0_23, %c0_24] : memref<1x1x128xf32, #tpu.memory_space<vmem>>, vector<1x1x128xf32>
      %64 = vector.shape_cast %63 : vector<1x1x128xf32> to vector<1x128xf32>
      %65 = vector.shape_cast %62 : vector<1x128xf32> to vector<1x1x128xf32>
      tpu.vector_store %arg4[%c0_22, %c0_23, %c0_24], %65 {strides = array<i32>} : memref<1x1x128xf32, #tpu.memory_space<vmem>>, vector<1x1x128xf32>,
    } else {
    }
    return
  }
  func.func @transform_0(%arg0: i32, %arg1: i32) -> (i32, i32) {
    %c1_i32 = arith.constant 1 : i32
    %0 = arith.muli %arg0, %c1_i32 : i32
    %1 = arith.addi %0, %arg1 : i32
    %c0_i32 = arith.constant 0 : i32
    %2 = arith.minsi %1, %c0_i32 : i32
    %c0_i32_0 = arith.constant 0 : i32
    %c0_i32_1 = arith.constant 0 : i32
    return %2, %c0_i32_0 : i32, i32
  }
  func.func @transform_1(%arg0: i32, %arg1: i32) -> (i32, i32) {
    %c1_i32 = arith.constant 1 : i32
    %0 = arith.muli %arg0, %c1_i32 : i32
    %1 = arith.addi %0, %arg1 : i32
    %c0_i32 = arith.constant 0 : i32
    %2 = arith.minsi %1, %c0_i32 : i32
    %c0_i32_0 = arith.constant 0 : i32
    %c0_i32_1 = arith.constant 0 : i32
    return %2, %c0_i32_0 : i32, i32
  }
  func.func @transform_2(%arg0: i32, %arg1: i32) -> (i32, i32, i32) {
    %c0_i32 = arith.constant 0 : i32
    %c0_i32_0 = arith.constant 0 : i32
    %c0_i32_1 = arith.constant 0 : i32
    return %arg0, %c0_i32, %c0_i32_0 : i32, i32, i32
  }
}

</mosaic_0001>

<llo_original>
// kernel: tpu_custom_call.1
$region0: #{tpu_custom_call.1}
  #allocation0 [shape = 'u32[]', space=smem, size = 0x4, offset = 0x4, fixed_abs, tag = 'smem constant byte address 0x4 - core index']
  #allocation1 [shape = 'u32[144,128]{1,0:T(1,128)}', space=vmem, size = 0x12000, scoped, tag = 'internal scratch']
  %s0 = inlined_call_operand.hbm [shape: f32[16,128], index: 0, kind: input, shape index: {}]
  %s1 = inlined_call_operand.hbm [shape: s8[16,128], index: 1, kind: input, shape index: {}]
  %s2 = inlined_call_operand.hbm [shape: f32[1,1,128], index: 2, kind: output, shape index: {}]
  %s3 = sld [smem:[#allocation0]]
  $region38: #{tpu_custom_call.1} parent=0
    _
  %s5 = ssub.s32 1, %s3
  %s6 = scalar_select 0, %s5, %s3
  $region1: #{tpu_custom_call.1} parent=0
    #allocation2 [shape = 'u8[8192]{0}', space=vmem, size = 0x2000, scoped, tag = 'input window, operand 0, single buffered']
    #allocation3 [shape = 's32[1]{0}', space=sflag, size = 0x4, scoped, tag = 'scoped memory for tpu_custom_call.1']
    #allocation4 [shape = 's32[1]{0}', space=sflag, size = 0x4, scoped, tag = 'scoped memory for tpu_custom_call.1']
    #allocation5 [shape = 'u8[2048]{0}', space=vmem, size = 0x800, scoped, tag = 'input window, operand 1, single buffered']
    #allocation6 [shape = 's32[1]{0}', space=sflag, size = 0x4, scoped, tag = 'scoped memory for tpu_custom_call.1']
    #allocation7 [shape = 'u8[512]{0}', space=vmem, size = 0x400, scoped, tag = 'output window, operand 0, single buffered']
    %7 = vsyncpa [#allocation3], 0
    %8 = vsyncpa [#allocation6], 0
    %9 = vsyncpa [#allocation4], 0
    // Predicated region
    $region2: #{tpu_custom_call.1} parent=1 // pred_check
      _
    $region3: #{tpu_custom_call.1} parent=1 // pred_check_branch
      %11 = sbr.rel (0) target = $region5
    $region4: #{tpu_custom_call.1} parent=1 // pred_region
      %s12 = sadd.s32 0, 0
      %p13 = scmp.lt.s32.totalorder %s12, 0
      %s14 = scalar_select %p13, %s12, 0
      %s15 = smul.u32 2, %s14
      %s17 = ssub.s32 256, 256
      %18 = vsyncadd [#allocation3], %s17
      %s19 = smul.addr %s15, 128
      %s20 = scalar_lea.hbm %s0, %s19
      %s21 = sshll.u32 [#allocation2], 4
      %s22 = int_to_ptr.vmem [resolvable:$true] %s21
      %27 = dma.hbm_to_vmem [thread:$0]  %s20, 256, %s22, [#allocation3], 128, 128, 8
    $region5: #{tpu_custom_call.1} parent=1 // pred_fallthru
      _
    // Predicated region
    $region6: #{tpu_custom_call.1} parent=1 // pred_check
      _
    $region7: #{tpu_custom_call.1} parent=1 // pred_check_branch
      %29 = sbr.rel (0) target = $region9
    $region8: #{tpu_custom_call.1} parent=1 // pred_region
      %s30 = sadd.s32 0, 0
      %p31 = scmp.lt.s32.totalorder %s30, 0
      %s32 = scalar_select %p31, %s30, 0
      %s33 = smul.u32 2, %s32
      %s35 = ssub.s32 64, 64
      %36 = vsyncadd [#allocation6], %s35
      %s37 = smul.addr %s33, 32
      %s38 = scalar_lea.hbm %s1, %s37
      %s39 = sshll.u32 [#allocation5], 4
      %s40 = int_to_ptr.vmem [resolvable:$true] %s39
      %45 = dma.hbm_to_vmem [thread:$0]  %s38, 64, %s40, [#allocation6], 32, 32, 2
    $region9: #{tpu_custom_call.1} parent=1 // pred_fallthru
      _
    // Predicated region
    $region10: #{tpu_custom_call.1} parent=1 // pred_check
      _
    $region11: #{tpu_custom_call.1} parent=1 // pred_check_branch
      %47 = sbr.rel (0) target = $region13
    $region12: #{tpu_custom_call.1} parent=1 // pred_region
      %48 = dma.done [#allocation3], 256
    $region13: #{tpu_custom_call.1} parent=1 // pred_fallthru
      _
    // Predicated region
    $region14: #{tpu_custom_call.1} parent=1 // pred_check
      _
    $region15: #{tpu_custom_call.1} parent=1 // pred_check_branch
      %50 = sbr.rel (0) target = $region17
    $region16: #{tpu_custom_call.1} parent=1 // pred_region
      %51 = dma.done [#allocation6], 64
    $region17: #{tpu_custom_call.1} parent=1 // pred_fallthru
      _
    %s52 = sadd.s32 0, 0
    %p53 = scmp.lt.s32.totalorder %s52, 0
    %s54 = scalar_select %p53, %s52, 0
    %s55 = smul.u32 2, %s54
    %s56 = sadd.s32 0, 0
    %p57 = scmp.lt.s32.totalorder %s56, 0
    %s58 = scalar_select %p57, %s56, 0
    %s59 = smul.u32 2, %s58
    %p60 = scmp.eq.s32.totalorder 0, 0
    // Predicated region
    $region18: #{tpu_custom_call.1} parent=1 // pred_check
      %p61 = pneg %p60
    $region19: #{tpu_custom_call.1} parent=1 // pred_check_branch
      %63 = sbr.rel (%p61) target = $region21
    $region20: #{tpu_custom_call.1} parent=1 // pred_region
      %64 = vst [vmem:[#allocation7] sm:$0x1] 0.0
    $region21: #{tpu_custom_call.1} parent=1 // pred_fallthru
      _
    %v65 = vld [vmem:[#allocation2] sm:$0xff]
    %v66 = vld [vmem:[#allocation2 + $0x8] sm:$0xff]
    %v67 = vld [vmem:[#allocation5] sm:$0x3]
    %v68 = vld [vmem:[#allocation5 + $0x2] sm:$0x3]
    %v69 = vunpack.c.0.s8 %v67
    %v70 = vunpack.c.0.s8 %v68
    %v71 = vcvt.s32.f32 %v69
    %v72 = vcvt.s32.f32 %v70
    %v73 = vand.u32 2147483647, %v65
    %v74 = vand.u32 2147483647, %v66
    %v75 = vsub.f32 0.0, %v73
    %v76 = vsub.f32 0.0, %v74
    %v77 = vmul.f32 %v75, 1.442695
    %v78 = vpow.pop %v77
    %v79 = vmul.f32 %v76, 1.442695
    %v80 = vpow.pop %v79
    %v81 = vmax.f32 %v65, 0.0
    %v82 = vmax.f32 %v66, 0.0
    %v83 = vmul.f32 %v65, %v71
    %v84 = vmul.f32 %v66, %v72
    %v85 = vsub.f32 %v81, %v83
    %v86 = vsub.f32 %v82, %v84
    %v87 = vadd.f32 %v78, 1.0
    %v88 = vlog2.pop %v87
    %v89 = vmul.f32 %v88, 0.6931472
    %v90 = vmul.f32 -0.5, %v78
    %v91 = vadd.f32 %v90, 1.0
    %v92 = vmul.f32 %v91, %v78
    %v93 = vand.u32 2147483647, %v78
    %vm94 = vcmp.lt.f32.partialorder %v93, 0.0004427343
    %v95 = vsel %vm94, %v92, %v89
    %v96 = vadd.f32 %v80, 1.0
    %v97 = vlog2.pop %v96
    %v98 = vmul.f32 %v97, 0.6931472
    %v99 = vmul.f32 -0.5, %v80
    %v100 = vadd.f32 %v99, 1.0
    %v101 = vmul.f32 %v100, %v80
    %v102 = vand.u32 2147483647, %v80
    %vm103 = vcmp.lt.f32.partialorder %v102, 0.0004427343
    %v104 = vsel %vm103, %v101, %v98
    %v105 = vadd.f32 %v85, %v95
    %v106 = vadd.f32 %v86, %v104
    %v107 = vadd.f32 %v78, 1.0
    %v108 = vadd.f32 %v80, 1.0
    %v109 = vrcp.pop %v107
    %v110 = vmul.f32 1.0, %v109
    %v111 = vrcp.pop %v108
    %v112 = vmul.f32 1.0, %v111
    %vm113 = vcmp.ge.f32.partialorder %v65, 0.0
    %vm114 = vcmp.ge.f32.partialorder %v66, 0.0
    %v115 = vmul.f32 %v78, %v110
    %v116 = vmul.f32 %v80, %v112
    %v117 = vsel %vm113, %v110, %v115
    %v118 = vsel %vm114, %v112, %v116
    %v119 = vadd.f32 %v117, %v71
    %v120 = vadd.f32 %v118, %v72
    %v121 = vmul.f32 %v117, 2.0
    %v122 = vmul.f32 %v118, 2.0
    %v123 = vmul.f32 %v121, %v71
    %v124 = vmul.f32 %v122, %v72
    %v125 = vsub.f32 %v119, %v123
    %v126 = vsub.f32 %v120, %v124
    %v127 = vmul.f32 %v71, -0.5
    %v128 = vmul.f32 %v72, -0.5
    %v129 = vadd.f32 %v127, 0.75
    %v130 = vadd.f32 %v128, 0.75
    %v131 = vmul.f32 %v125, %v125
    %v132 = vmul.f32 %v126, %v126
    %v133 = vmul.f32 %v129, %v131
    %v134 = vmul.f32 %v130, %v132
    %v135 = vmul.f32 %v133, %v105
    %v136 = vmul.f32 %v134, %v106
    %s137 = sadd.s32 0, 0
    %s138 = smul.u32 %s137, 16
    %s139 = sadd.s32 %s138, 16
    %s140 = smul.u32 %s139, 128
    %p141 = scmp.le.s32.totalorder %s140, 2048
    // Predicated region
    $region22: #{tpu_custom_call.1} parent=1 // pred_check
      %p142 = pneg %p141
    $region23: #{tpu_custom_call.1} parent=1 // pred_check_branch
      %144 = sbr.rel (%p142) target = $region25
    $region24: #{tpu_custom_call.1} parent=1 // pred_region
      %v145 = vld [vmem:[#allocation7] sm:$0x1]
      %v146 = vadd.f32 %v135, %v136
      %v147 = vrot.slane %v146, 4
      %v148 = vadd.f32 %v146, %v147
      %v149 = vrot.slane %v148, 2
      %v150 = vadd.f32 %v148, %v149
      %v151 = vrot.slane %v150, 1
      %v152 = vadd.f32 %v150, %v151
      %v153 = vadd.f32 %v145, %v152
      %154 = vst [vmem:[#allocation7] sm:$0x1] %v153
    $region25: #{tpu_custom_call.1} parent=1 // pred_fallthru
      _
    %p155 = scmp.gt.s32.totalorder %s140, 2048
    // Predicated region
    $region26: #{tpu_custom_call.1} parent=1 // pred_check
      %p156 = pneg %p155
    $region27: #{tpu_custom_call.1} parent=1 // pred_check_branch
      %158 = sbr.rel (%p156) target = $region29
    $region28: #{tpu_custom_call.1} parent=1 // pred_region
      %v159 = vlaneseq
      %v160 = vshrl.u32 %v159, 7
      %v161 = vadd.s32 %v160, 8
      %v162 = vlaneseq
      %v163 = vand.u32 %v162, 127
      %v164 = vstv %s138
      %v165 = vadd.s32 %v164, %v160
      %v166 = vadd.s32 %v164, %v161
      %v167 = vmul.u32 %v165, 128
      %v168 = vmul.u32 %v166, 128
      %v169 = vadd.s32 %v167, %v163
      %v170 = vadd.s32 %v168, %v163
      %vm171 = vcmp.lt.s32.totalorder %v169, 2048
      %vm172 = vcmp.lt.s32.totalorder %v170, 2048
      %v173 = vsel %vm171, %v135, 0.0
      %v174 = vsel %vm172, %v136, 0.0
      %v175 = vld [vmem:[#allocation7] sm:$0x1]
      %v176 = vadd.f32 %v173, %v174
      %v177 = vrot.slane %v176, 4
      %v178 = vadd.f32 %v176, %v177
      %v179 = vrot.slane %v178, 2
      %v180 = vadd.f32 %v178, %v179
      %v181 = vrot.slane %v180, 1
      %v182 = vadd.f32 %v180, %v181
      %v183 = vadd.f32 %v175, %v182
      %184 = vst [vmem:[#allocation7] sm:$0x1] %v183
    $region29: #{tpu_custom_call.1} parent=1 // pred_fallthru
      _
    // Predicated region
    $region30: #{tpu_custom_call.1} parent=1 // pred_check
      _
    $region31: #{tpu_custom_call.1} parent=1 // pred_check_branch
      %186 = sbr.rel (0) target = $region33
    $region32: #{tpu_custom_call.1} parent=1 // pred_region
      %s188 = ssub.s32 16, 16
      %189 = vsyncadd [#allocation4], %s188
      %s191 = sshll.u32 [#allocation7], 4
      %s192 = int_to_ptr.vmem [resolvable:$true] %s191
      %194 = dma.vmem_to_hbm [thread:$0]  %s192, 16, %s2, [#allocation4]
    $region33: #{tpu_custom_call.1} parent=1 // pred_fallthru
      _
    // Predicated region
    $region34: #{tpu_custom_call.1} parent=1 // pred_check
      _
    $region35: #{tpu_custom_call.1} parent=1 // pred_check_branch
      %196 = sbr.rel (0) target = $region37
    $region36: #{tpu_custom_call.1} parent=1 // pred_region
      %197 = dma.done [#allocation4], 16
    $region37: #{tpu_custom_call.1} parent=1 // pred_fallthru
      _
    %198 = vsyncpa [#allocation3], 1
    %199 = vsyncpa [#allocation6], 1
    %200 = vsyncpa [#allocation4], 1

</llo_original>
